<compile_context>
chip_gen: v7x
topology: tpu7x:2x2x1
jax: 0.10.0
libtpu: 0.0.40
codegen_flags: <defaults>
</compile_context>

<pallas_src>
import math
from functools import partial

import jax
import jax.numpy as jnp
from jax import lax
from jax.experimental import pallas as pl
from jax.experimental.pallas import tpu as pltpu


def _round_up(x, m):
    return ((x + m - 1) // m) * m


def node_features_kernel(x_ref, col_ref, pw_ref, out_ref, deg_acc,
                         *, feat_dim, max_degree):
    """x_ref:   [tile_n, K_pad] f32 (zero in lanes >= F and >= F+DEG)
       col_ref: [G, 8, 128] int32 edge targets (pad = -1)
       pw_ref:  [K_pad, D_pad] f32 packed weights
       out_ref: [tile_n, D_pad] f32
       deg_acc: [tile_n, 8, 128] int32 VMEM scratch (lane-dense partial counts)."""
    n = pl.program_id(0)
    e = pl.program_id(1)
    tile_n, k_pad = x_ref.shape

    # --- init degree accumulator at the start of the edge loop ---
    @pl.when(e == 0)
    def _():
        deg_acc[...] = jnp.zeros_like(deg_acc)

    # --- partial in-degree histogram for this (node-tile, edge-tile) ---
    # Offset the *small* col tile by the scalar node-tile base so the node-id
    # iota below is grid-invariant (no per-step iota+add over the full tensor).
    # Padded col entries are -1 and never match a relative node id in [0, tile_n).
    col_rel = col_ref[...] - n * tile_n                               # [G, 8, 128]
    node_iota = lax.broadcasted_iota(jnp.int32, (tile_n,) + col_rel.shape, 0)
    matches = (col_rel[None] == node_iota).astype(jnp.int32)          # [tile_n, G, 8, 128]
    # axis=1 sum = pure elementwise vreg adds; accumulator stays full-vreg,
    # unmasked stores; all XLU work is deferred to the epilogue.
    deg_acc[...] += jnp.sum(matches, axis=1)                          # [tile_n, 8, 128]

    # --- epilogue: fused (Linear + degree embedding) matmul on the last edge tile ---
    @pl.when(e == pl.num_programs(1) - 1)
    def _():
        deg = jnp.sum(deg_acc[...], axis=1)                           # [tile_n, 128] (sublane reduce, once)
        deg = jnp.sum(deg, axis=1, keepdims=True)                     # [tile_n, 1]   (lane reduce, once)
        deg = jnp.minimum(deg, max_degree - 1)                        # clamp like jnp gather
        k_ids = lax.broadcasted_iota(jnp.int32, (tile_n, k_pad), 1)   # [tile_n, K_pad]
        # one-hot occupying lanes [F, F+DEG); lanes < F or >= F+DEG never match
        onehot = ((k_ids - feat_dim) == deg).astype(x_ref.dtype)
        lhs = x_ref[...] + onehot                                     # x block is 0 in lanes >= F
        out_ref[...] = jnp.dot(lhs, pw_ref[...],
                               preferred_element_type=jnp.float32)


def node_features(x, edge_index, w, b, deg_table, *, tile_n=256, tile_e=4096):
    """x: [N, F] f32, edge_index: [2, E] int32, w: [D, F], b: [D], deg_table: [DEG, D]."""
    N, F = x.shape
    D = w.shape[0]
    DEG = deg_table.shape[0]
    K = F + DEG

    # lane-dense / MXU-aligned padding of the contraction and output dims
    K_pad = _round_up(K, 128)
    D_pad = _round_up(D, 128)

    # node tiling: second-to-last dim must be a multiple of 8; keep >= 2 node
    # blocks when possible so the "parallel" axis can shard across v7x cores.
    tile_n = min(tile_n, _round_up(N, 8))
    if N > 8:
        tile_n = min(tile_n, _round_up((N + 1) // 2, 8))
    N_pad = _round_up(N, tile_n)

    # edge tiling: dense [groups, 8, 128] layout, one vreg per 1024 edges
    E = edge_index.shape[1]
    E_pad = _round_up(max(E, 1), 1024)
    tile_e = max(1024, min(tile_e, E_pad))
    tile_e = (tile_e // 1024) * 1024
    E_pad = _round_up(E_pad, tile_e)
    G_total = E_pad // 1024
    G_tile = tile_e // 1024

    # col indices padded with -1 (never match any relative node id >= 0)
    col = edge_index[1].astype(jnp.int32)
    col_flat = jnp.full((E_pad,), -1, dtype=jnp.int32).at[:E].set(col)
    col_p = col_flat.reshape(G_total, 8, 128)

    # x zero-padded to [N_pad, K_pad]: real features in lanes [0, F), zeros elsewhere
    x_pad = jnp.zeros((N_pad, K_pad), jnp.float32).at[:N, :F].set(x)

    # packed weights [K_pad, D_pad]: rows [0,F) = W^T, rows [F,F+DEG) = deg_table + bias
    pw = jnp.zeros((K_pad, D_pad), jnp.float32)
    pw = pw.at[:F, :D].set(jnp.transpose(w))
    pw = pw.at[F:K, :D].set(deg_table + b[None, :])

    grid = (N_pad // tile_n, E_pad // tile_e)

    out = pl.pallas_call(
        partial(node_features_kernel, feat_dim=F, max_degree=DEG),
        out_shape=jax.ShapeDtypeStruct((N_pad, D_pad), jnp.float32),
        grid_spec=pltpu.PrefetchScalarGridSpec(
            num_scalar_prefetch=0,
            grid=grid,
            in_specs=[
                pl.BlockSpec((tile_n, K_pad), lambda n, e: (n, 0)),      # x tile (resident over e)
                pl.BlockSpec((G_tile, 8, 128), lambda n, e: (e, 0, 0)),  # dense edge tile (pipelined)
                pl.BlockSpec((K_pad, D_pad), lambda n, e: (0, 0)),       # packed weights (resident)
            ],
            out_specs=pl.BlockSpec((tile_n, D_pad), lambda n, e: (n, 0)),
            scratch_shapes=[pltpu.VMEM((tile_n, 8, 128), jnp.int32)],
        ),
        compiler_params=pltpu.CompilerParams(
            dimension_semantics=("parallel", "arbitrary")),
        # NOTE: when sweeping tile_n/tile_e up at real scale, raise
        # vmem_limit_bytes and keep the [tile_n, tile_e] compare intermediate
        # well under the per-chip VMEM budget (64 MiB on v7x).
    )(x_pad, col_p, pw)

    return out[:N, :D]


def reference(x, edge_index, w, b, deg_table):
    col = edge_index[1]
    N = x.shape[0]
    deg = jnp.zeros((N,), jnp.int32).at[col].add(1)
    deg = jnp.minimum(deg, deg_table.shape[0] - 1)
    lin = x @ w.T + b
    emb = deg_table[deg]
    return lin + emb


if __name__ == "__main__":
    # Module hyperparameters (small, consistent with the forward pass).
    N = 16            # number of nodes
    feature_num = 8   # input node feature dim
    embedding_dim = 32
    max_degree = 16   # size of the degree embedding table
    E = 32            # number of edges
    layer = 2

    key = jax.random.PRNGKey(0)
    k_x, k_e, k_w, k_d = jax.random.split(key, 4)

    x = jax.random.normal(k_x, (N, feature_num), dtype=jnp.float32)
    edge_index = jax.random.randint(k_e, (2, E), 0, N, dtype=jnp.int32)

    # Deterministic parameter init mirroring init_params():
    #   Linear.weight ~ N(0, 0.02/sqrt(layer)), Linear.bias = 0
    #   Embedding.weight ~ N(0, 0.02)
    w = jax.random.normal(k_w, (embedding_dim, feature_num), jnp.float32) * (
        0.02 / math.sqrt(layer))
    b = jnp.zeros((embedding_dim,), jnp.float32)
    deg_table = jax.random.normal(k_d, (max_degree, embedding_dim), jnp.float32) * 0.02

    out = node_features(x, edge_index, w, b, deg_table)
    out = jax.block_until_ready(out)

    ref = reference(x, edge_index, w, b, deg_table)
    assert out.shape == (N, embedding_dim)
    assert jnp.allclose(out, ref, atol=1e-5, rtol=1e-5)

    print("KERNEL_OK")
</pallas_src>

<mosaic_0001>
module attributes {stable_mosaic.version = 11 : i64} {
  func.func @node_features_kernel(%arg0: i32, %arg1: i32, %arg2: memref<8x128xf32, #tpu.memory_space<vmem>>, %arg3: memref<1x8x128xi32, #tpu.memory_space<vmem>>, %arg4: memref<128x128xf32, #tpu.memory_space<vmem>>, %arg5: memref<8x128xf32, #tpu.memory_space<vmem>>, %arg6: memref<8x8x128xi32, #tpu.memory_space<vmem>>) attributes {dimension_semantics = [#tpu.dimension_semantics<parallel>, #tpu.dimension_semantics<arbitrary>], iteration_bounds = array<i64: 2, 1>, scalar_prefetch = 0 : i64, scratch_operands = 1 : i64, tpu.core_type = #tpu.core_type<tc>, window_params = [{transform_indices = @transform_0, window_bounds = array<i64: 8, 128>}, {transform_indices = @transform_1, window_bounds = array<i64: 1, 8, 128>}, {pipeline_mode = #tpu.pipeline_mode<synchronous>, transform_indices = @transform_2, window_bounds = array<i64: 128, 128>}, {transform_indices = @transform_3, window_bounds = array<i64: 8, 128>}]} {
    %c0_i32 = arith.constant 0 : i32
    %0 = arith.cmpi eq, %arg1, %c0_i32 : i32
    %1 = arith.extui %0 : i1 to i32
    %c0_i32_0 = arith.constant 0 : i32
    %2 = arith.cmpi ne, %1, %c0_i32_0 : i32
    scf.if %2 {
      %c0_i32_11 = arith.constant 0 : i32
      %19 = vector.broadcast %c0_i32_11 : i32 to vector<8x8x128xi32>
      %c0_12 = arith.constant 0 : index
      %c0_13 = arith.constant 0 : index
      %c0_14 = arith.constant 0 : index
      %20 = vector.load %arg6[%c0_12, %c0_13, %c0_14] : memref<8x8x128xi32, #tpu.memory_space<vmem>>, vector<8x8x128xi32>
      tpu.vector_store %arg6[%c0_12, %c0_13, %c0_14], %19 {strides = array<i32>} : memref<8x8x128xi32, #tpu.memory_space<vmem>>, vector<8x8x128xi32>,
    } else {
    }
    %c0 = arith.constant 0 : index
    %c0_1 = arith.constant 0 : index
    %c0_2 = arith.constant 0 : index
    %3 = vector.load %arg3[%c0, %c0_1, %c0_2] : memref<1x8x128xi32, #tpu.memory_space<vmem>>, vector<1x8x128xi32>
    %c8_i32 = arith.constant 8 : i32
    %4 = arith.muli %arg0, %c8_i32 : i32
    %5 = vector.broadcast %4 : i32 to vector<1x8x128xi32>
    %6 = arith.subi %3, %5 : vector<1x8x128xi32>
    %7 = tpu.iota {dimensions = array<i32: 0>} : vector<8x1x8x128xi32>
    %8 = vector.shape_cast %6 : vector<1x8x128xi32> to vector<1x1x8x128xi32>
    %9 = vector.broadcast %8 : vector<1x1x8x128xi32> to vector<8x1x8x128xi32>
    %10 = arith.cmpi eq, %9, %7 : vector<8x1x8x128xi32>
    %11 = arith.extui %10 : vector<8x1x8x128xi1> to vector<8x1x8x128xi32>
    %c0_3 = arith.constant 0 : index
    %c0_4 = arith.constant 0 : index
    %c0_5 = arith.constant 0 : index
    %12 = vector.load %arg6[%c0_3, %c0_4, %c0_5] : memref<8x8x128xi32, #tpu.memory_space<vmem>>, vector<8x8x128xi32>
    %cst = arith.constant dense<0> : vector<8x8x128xi32>
    %13 = vector.multi_reduction <add>, %11, %cst [1] : vector<8x1x8x128xi32> to vector<8x8x128xi32>
    %14 = arith.addi %12, %13 : vector<8x8x128xi32>
    %c0_6 = arith.constant 0 : index
    %c0_7 = arith.constant 0 : index
    %c0_8 = arith.constant 0 : index
    %15 = vector.load %arg6[%c0_6, %c0_7, %c0_8] : memref<8x8x128xi32, #tpu.memory_space<vmem>>, vector<8x8x128xi32>
    tpu.vector_store %arg6[%c0_6, %c0_7, %c0_8], %14 {strides = array<i32>} : memref<8x8x128xi32, #tpu.memory_space<vmem>>, vector<8x8x128xi32>,
    %c0_i32_9 = arith.constant 0 : i32
    %16 = arith.cmpi eq, %arg1, %c0_i32_9 : i32
    %17 = arith.extui %16 : i1 to i32
    %c0_i32_10 = arith.constant 0 : i32
    %18 = arith.cmpi ne, %17, %c0_i32_10 : i32
    scf.if %18 {
      %c0_11 = arith.constant 0 : index
      %c0_12 = arith.constant 0 : index
      %c0_13 = arith.constant 0 : index
      %19 = vector.load %arg6[%c0_11, %c0_12, %c0_13] : memref<8x8x128xi32, #tpu.memory_space<vmem>>, vector<8x8x128xi32>
      %cst_14 = arith.constant dense<0> : vector<8x128xi32>
      %20 = vector.multi_reduction <add>, %19, %cst_14 [1] : vector<8x8x128xi32> to vector<8x128xi32>
      %cst_15 = arith.constant dense<0> : vector<8xi32>
      %21 = vector.multi_reduction <add>, %20, %cst_15 [1] : vector<8x128xi32> to vector<8xi32>
      %22 = vector.shape_cast %21 : vector<8xi32> to vector<8x1xi32>
      %c15_i32 = arith.constant 15 : i32
      %23 = vector.broadcast %c15_i32 : i32 to vector<8x1xi32>
      %24 = arith.minsi %22, %23 : vector<8x1xi32>
      %25 = tpu.iota {dimensions = array<i32: 1>} : vector<8x128xi32>
      %c8_i32_16 = arith.constant 8 : i32
      %26 = vector.broadcast %c8_i32_16 : i32 to vector<8x128xi32>
      %27 = arith.subi %25, %26 : vector<8x128xi32>
      %28 = vector.broadcast %24 : vector<8x1xi32> to vector<8x128xi32>
      %29 = arith.cmpi eq, %27, %28 : vector<8x128xi32>
      %30 = arith.extui %29 : vector<8x128xi1> to vector<8x128xi32>
      %31 = arith.sitofp %30 : vector<8x128xi32> to vector<8x128xf32>
      %c0_17 = arith.constant 0 : index
      %c0_18 = arith.constant 0 : index
      %32 = vector.load %arg2[%c0_17, %c0_18] : memref<8x128xf32, #tpu.memory_space<vmem>>, vector<8x128xf32>
      %33 = arith.addf %32, %31 : vector<8x128xf32>
      %c0_19 = arith.constant 0 : index
      %c0_20 = arith.constant 0 : index
      %34 = vector.load %arg4[%c0_19, %c0_20] : memref<128x128xf32, #tpu.memory_space<vmem>>, vector<128x128xf32>
      %cst_21 = arith.constant dense<0.000000e+00> : vector<8x128xf32>
      %35 = tpu.matmul %33, %34, %cst_21 {dimension_numbers = #tpu.dot_dimension_numbers<[1], [0], [0], [1], [0, 0, 1, 1], [], []>} : vector<8x128xf32>, vector<128x128xf32>, vector<8x128xf32> -> vector<8x128xf32>
      %c0_22 = arith.constant 0 : index
      %c0_23 = arith.constant 0 : index
      %36 = vector.load %arg5[%c0_22, %c0_23] : memref<8x128xf32, #tpu.memory_space<vmem>>, vector<8x128xf32>
      tpu.vector_store %arg5[%c0_22, %c0_23], %35 {strides = array<i32>} : memref<8x128xf32, #tpu.memory_space<vmem>>, vector<8x128xf32>,
    } else {
    }
    return
  }
  func.func @transform_0(%arg0: i32, %arg1: i32) -> (i32, i32) {
    %c0_i32 = arith.constant 0 : i32
    %c0_i32_0 = arith.constant 0 : i32
    return %arg0, %c0_i32 : i32, i32
  }
  func.func @transform_1(%arg0: i32, %arg1: i32) -> (i32, i32, i32) {
    %c0_i32 = arith.constant 0 : i32
    %c0_i32_0 = arith.constant 0 : i32
    %c0_i32_1 = arith.constant 0 : i32
    return %arg1, %c0_i32, %c0_i32_0 : i32, i32, i32
  }
  func.func @transform_2(%arg0: i32, %arg1: i32) -> (i32, i32) {
    %c0_i32 = arith.constant 0 : i32
    %c0_i32_0 = arith.constant 0 : i32
    %c0_i32_1 = arith.constant 0 : i32
    return %c0_i32, %c0_i32_0 : i32, i32
  }
  func.func @transform_3(%arg0: i32, %arg1: i32) -> (i32, i32) {
    %c0_i32 = arith.constant 0 : i32
    %c0_i32_0 = arith.constant 0 : i32
    return %arg0, %c0_i32 : i32, i32
  }
}

</mosaic_0001>

<llo_original>
// kernel: tpu_custom_call.1
$region0: #{tpu_custom_call.1}
  #allocation0 [shape = 'u32[]', space=smem, size = 0x4, offset = 0x4, fixed_abs, tag = 'smem constant byte address 0x4 - core index']
  #allocation1 [shape = 'u32[144,128]{1,0:T(1,128)}', space=vmem, size = 0x12000, scoped, tag = 'internal scratch']
  #allocation2 [shape = 's32[8,8,128]{2,1,0:T(8,128)}', space=vmem, size = 0x8000, scoped, tag = 'scratch operand']
  %s0 = inlined_call_operand.hbm [shape: f32[16,128], index: 0, kind: input, shape index: {}]
  %s1 = inlined_call_operand.hbm [shape: s32[1,8,128], index: 1, kind: input, shape index: {}]
  %s2 = inlined_call_operand.hbm [shape: f32[128,128], index: 2, kind: input, shape index: {}]
  %s3 = inlined_call_operand.hbm [shape: f32[16,128], index: 3, kind: output, shape index: {}]
  %s4 = sld [smem:[#allocation0]]
  $region65: #{tpu_custom_call.1} parent=0
    _
  %s6 = ssub.s32 1, %s4
  %s7 = scalar_select 0, %s6, %s4
  $region1: #{tpu_custom_call.1} parent=0
    #allocation3 [shape = 'u8[8192]{0}', space=vmem, size = 0x2000, scoped, tag = 'input window, operand 0']
    #allocation4 [shape = 's32[2]{0}', space=sflag, size = 0x8, scoped, tag = 'scoped memory for tpu_custom_call.1']
    #allocation5 [shape = 's32[2]{0}', space=sflag, size = 0x8, scoped, tag = 'scoped memory for tpu_custom_call.1']
    #allocation6 [shape = 'u8[4096]{0}', space=vmem, size = 0x1000, scoped, tag = 'input window, operand 1, single buffered']
    #allocation7 [shape = 's32[1]{0}', space=sflag, size = 0x4, scoped, tag = 'scoped memory for tpu_custom_call.1']
    #allocation8 [shape = 'u8[65536]{0}', space=vmem, size = 0x10000, scoped, tag = 'input window, operand 2, single buffered']
    #allocation9 [shape = 'u8[8192]{0}', space=vmem, size = 0x2000, scoped, tag = 'output window, operand 0']
    %8 = vsyncpa [#allocation4], 0
    %s9 = scalar_lea.sflag [#allocation4], 1
    %10 = vsyncpa %s9, 0
    %11 = vsyncpa [#allocation7], 0
    %12 = vsyncpa [#allocation5], 0
    %s13 = scalar_lea.sflag [#allocation5], 1
    %14 = vsyncpa %s13, 0
    loop: start=0, step=1, limit=4
    $region2: #{tpu_custom_call.1} parent=1 // loop_pre_header
      _
    $region3: #{tpu_custom_call.1} parent=1 // loop_header
      %s16 = sphi 0, %s20
      %p17 = scmp.ge.s32.totalorder %s16, 4
      %s23 = sphi 0, %s35
      %s24 = sphi 0, %s31
      %s25 = sphi 0, %s23
      %s26 = sphi 0, %s24
      %s27 = sphi 0, %s25
      %s28 = sphi 0, %s26
      %s38 = sphi 0, %s40
      %s41 = sphi 0, %s38
      %s42 = sphi 0, %s41
      %s58 = sphi 0, %s42
      %s64 = sphi 0, %s66
      %s67 = sphi 0, %s64
      %s68 = sphi 0, %s67
      %s84 = sphi 0, %s68
      %s88 = sphi 0, %s88
      %s90 = sphi 0, %s88
      %s91 = sphi 0, %s90
      %s105 = sphi 0, %s91
      %s111 = sphi 0, %s113
      %s114 = sphi 0, %s111
      %s115 = sphi 0, %s114
      %s131 = sphi 0, %s115
    $region4: #{tpu_custom_call.1} parent=1 // loop_header_branch
      %19 = sbr.rel (%p17) target = $region8
    $region5: #{tpu_custom_call.1} parent=1 // loop_body
      %s21 = ssub.s32 %s16, 1
      %s22 = ssub.s32 %s16, 2
      %s29 = sadd.s32 1, %s24
      %p30 = scmp.ge.s32.totalorder %s29, 1
      %s31 = scalar_select %p30, 0, %s29
      %s32 = sadd.s32 1, %s23
      %s33 = scalar_select %p30, %s32, %s23
      %p34 = scmp.ge.s32.totalorder %s33, 2
      %s35 = scalar_select %p34, 0, %s33
      %s36 = ssub.s32 %s23, %s35
      %p37 = scmp.eq.s32.totalorder %s36, 0
      %s39 = sadd.s32 %s38, 1
      %s40 = scalar_select %p37, %s38, %s39
      %p43 = pneg %p37
      %p44 = scmp.eq.s32.totalorder %s16, 1
      %p45 = por %p43, %p44
      %p46 = scmp.ne.s32.totalorder %s38, %s41
      %p47 = scmp.eq.s32.totalorder %s16, 0
      %p48 = por %p46, %p47
      %p49 = scmp.ne.s32.totalorder %s38, %s41
      %p50 = scmp.eq.s32.totalorder %s21, 1
      %p51 = por %p49, %p50
      %p52 = scmp.ne.s32.totalorder %s41, %s42
      %p53 = scmp.eq.s32.totalorder %s21, 0
      %p54 = por %p52, %p53
      %p55 = scmp.ne.s32.totalorder %s41, %s42
      %p56 = scmp.eq.s32.totalorder %s22, 1
      %p57 = por %p55, %p56
      %p59 = scmp.ne.s32.totalorder %s42, %s58
      %p60 = scmp.eq.s32.totalorder %s22, 0
      %p61 = por %p59, %p60
      %s62 = ssub.s32 %s24, %s31
      %p63 = scmp.eq.s32.totalorder %s62, 0
      %s65 = sadd.s32 %s64, 1
      %s66 = scalar_select %p63, %s64, %s65
      %p69 = pneg %p63
      %p70 = scmp.eq.s32.totalorder %s16, 1
      %p71 = por %p69, %p70
      %p72 = scmp.ne.s32.totalorder %s64, %s67
      %p73 = scmp.eq.s32.totalorder %s16, 0
      %p74 = por %p72, %p73
      %p75 = scmp.ne.s32.totalorder %s64, %s67
      %p76 = scmp.eq.s32.totalorder %s21, 1
      %p77 = por %p75, %p76
      %p78 = scmp.ne.s32.totalorder %s67, %s68
      %p79 = scmp.eq.s32.totalorder %s21, 0
      %p80 = por %p78, %p79
      %p81 = scmp.ne.s32.totalorder %s67, %s68
      %p82 = scmp.eq.s32.totalorder %s22, 1
      %p83 = por %p81, %p82
      %p85 = scmp.ne.s32.totalorder %s68, %s84
      %p86 = scmp.eq.s32.totalorder %s22, 0
      %p87 = por %p85, %p86
      %s89 = sadd.s32 %s88, 1
      %p92 = scmp.eq.s32.totalorder %s16, 1
      %p93 = scmp.ne.s32.totalorder %s88, %s90
      %p94 = scmp.eq.s32.totalorder %s16, 0
      %p95 = por %p93, %p94
      %p96 = scmp.ne.s32.totalorder %s88, %s90
      %p97 = scmp.eq.s32.totalorder %s21, 1
      %p98 = por %p96, %p97
      %p99 = scmp.ne.s32.totalorder %s90, %s91
      %p100 = scmp.eq.s32.totalorder %s21, 0
      %p101 = por %p99, %p100
      %p102 = scmp.ne.s32.totalorder %s90, %s91
      %p103 = scmp.eq.s32.totalorder %s22, 1
      %p104 = por %p102, %p103
      %p106 = scmp.ne.s32.totalorder %s91, %s105
      %p107 = scmp.eq.s32.totalorder %s22, 0
      %p108 = por %p106, %p107
      %s109 = ssub.s32 %s23, %s35
      %p110 = scmp.eq.s32.totalorder %s109, 0
      %s112 = sadd.s32 %s111, 1
      %s113 = scalar_select %p110, %s111, %s112
      %p116 = pneg %p110
      %p117 = scmp.eq.s32.totalorder %s16, 1
      %p118 = por %p116, %p117
      %p119 = scmp.ne.s32.totalorder %s111, %s114
      %p120 = scmp.eq.s32.totalorder %s16, 0
      %p121 = por %p119, %p120
      %p122 = scmp.ne.s32.totalorder %s111, %s114
      %p123 = scmp.eq.s32.totalorder %s21, 1
      %p124 = por %p122, %p123
      %p125 = scmp.ne.s32.totalorder %s114, %s115
      %p126 = scmp.eq.s32.totalorder %s21, 0
      %p127 = por %p125, %p126
      %p128 = scmp.ne.s32.totalorder %s114, %s115
      %p129 = scmp.eq.s32.totalorder %s22, 1
      %p130 = por %p128, %p129
      %p132 = scmp.ne.s32.totalorder %s115, %s131
      %p133 = scmp.eq.s32.totalorder %s22, 0
      %p134 = por %p132, %p133
      %p135 = scmp.le.s32.totalorder 1, %s16
      %p136 = scmp.lt.s32.totalorder %s16, 3
      %p137 = pnand %p135, %p136
      %p138 = pneg %p137
      // Predicated region
      $region9: #{tpu_custom_call.1} parent=5 // pred_check
        _
      $region10: #{tpu_custom_call.1} parent=5 // pred_check_branch
        %140 = sbr.rel (%p137) target = $region12
      $region11: #{tpu_custom_call.1} parent=5 // pred_region
        %s141 = ssub.s32 %s16, 1
        // Predicated region
        $region13: #{tpu_custom_call.1} parent=11 // pred_check
          %p142 = pneg %p80
        $region14: #{tpu_custom_call.1} parent=11 // pred_check_branch
          %144 = sbr.rel (%p142) target = $region16
        $region15: #{tpu_custom_call.1} parent=11 // pred_region
          %s146 = ssub.s32 128, 128
          %147 = vsyncadd [#allocation7], %s146
          %s148 = smul.addr %s26, 128
          %s149 = scalar_lea.hbm %s1, %s148
          %s151 = sshll.u32 [#allocation6], 4
          %s152 = int_to_ptr.vmem [resolvable:$true] %s151
          %154 = dma.hbm_to_vmem [thread:$0]  %s149, 128, %s152, [#allocation7]
        $region16: #{tpu_custom_call.1} parent=11 // pred_fallthru
          _
        // Predicated region
        $region17: #{tpu_custom_call.1} parent=11 // pred_check
          %p155 = pneg %p101
        $region18: #{tpu_custom_call.1} parent=11 // pred_check_branch
          %157 = sbr.rel (%p155) target = $region20
        $region19: #{tpu_custom_call.1} parent=11 // pred_region
          %s159 = ssub.s32 2048, 2048
          %160 = vsyncadd [#allocation7], %s159
          %s161 = sshll.u32 [#allocation8], 4
          %s162 = int_to_ptr.vmem [resolvable:$true] %s161
          %167 = dma.hbm_to_vmem [thread:$0]  %s2, 2048, %s162, [#allocation7], 128, 128, 8
        $region20: #{tpu_custom_call.1} parent=11 // pred_fallthru
          _
      $region12: #{tpu_custom_call.1} parent=5 // pred_fallthru
        _
      %p168 = scmp.lt.s32.totalorder %s16, 2
      // Predicated region
      $region21: #{tpu_custom_call.1} parent=5 // pred_check
        %p169 = pneg %p168
      $region22: #{tpu_custom_call.1} parent=5 // pred_check_branch
        %171 = sbr.rel (%p169) target = $region24
      $region23: #{tpu_custom_call.1} parent=5 // pred_region
        // Predicated region
        $region25: #{tpu_custom_call.1} parent=23 // pred_check
          %p172 = pneg %p48
        $region26: #{tpu_custom_call.1} parent=23 // pred_check_branch
          %174 = sbr.rel (%p172) target = $region28
        $region27: #{tpu_custom_call.1} parent=23 // pred_region
          %s175 = sand.u32 %s38, 1
          %s176 = scalar_lea.sflag [#allocation4], %s175
          %s177 = sand.u32 %s38, 1
          %s178 = smul.addr %s177, 8
          %s179 = scalar_lea.vmem [#allocation3], %s178
          %s181 = ssub.s32 128, 128
          %182 = vsyncadd %s176, %s181
          %s183 = smul.addr %s23, 128
          %s184 = scalar_lea.hbm %s0, %s183
          %s186 = sshll.u32 %s179, 4
          %s187 = int_to_ptr.vmem [resolvable:$true] %s186
          %189 = dma.hbm_to_vmem [thread:$0]  %s184, 128, %s187, %s176
        $region28: #{tpu_custom_call.1} parent=23 // pred_fallthru
          _
      $region24: #{tpu_custom_call.1} parent=5 // pred_fallthru
        _
      %p190 = scmp.le.s32.totalorder 1, %s16
      %p191 = scmp.lt.s32.totalorder %s16, 3
      %p192 = pnand %p190, %p191
      %p193 = pneg %p192
      // Predicated region
      $region29: #{tpu_custom_call.1} parent=5 // pred_check
        _
      $region30: #{tpu_custom_call.1} parent=5 // pred_check_branch
        %195 = sbr.rel (%p192) target = $region32
      $region31: #{tpu_custom_call.1} parent=5 // pred_region
        %s196 = ssub.s32 %s16, 1
        %s197 = sand.u32 %s41, 1
        %s198 = scalar_lea.sflag [#allocation4], %s197
        %s199 = sand.u32 %s41, 1
        %s200 = smul.addr %s199, 8
        %s201 = scalar_lea.vmem [#allocation3], %s200
        // Predicated region
        $region33: #{tpu_custom_call.1} parent=31 // pred_check
          %p202 = pneg %p54
        $region34: #{tpu_custom_call.1} parent=31 // pred_check_branch
          %204 = sbr.rel (%p202) target = $region36
        $region35: #{tpu_custom_call.1} parent=31 // pred_region
          %205 = dma.done %s198, 128
        $region36: #{tpu_custom_call.1} parent=31 // pred_fallthru
          _
        // Predicated region
        $region37: #{tpu_custom_call.1} parent=31 // pred_check
          %p206 = pneg %p80
        $region38: #{tpu_custom_call.1} parent=31 // pred_check_branch
          %208 = sbr.rel (%p206) target = $region40
        $region39: #{tpu_custom_call.1} parent=31 // pred_region
          %209 = dma.done [#allocation7], 128
        $region40: #{tpu_custom_call.1} parent=31 // pred_fallthru
          _
        // Predicated region
        $region41: #{tpu_custom_call.1} parent=31 // pred_check
          %p210 = pneg %p101
        $region42: #{tpu_custom_call.1} parent=31 // pred_check_branch
          %212 = sbr.rel (%p210) target = $region44
        $region43: #{tpu_custom_call.1} parent=31 // pred_region
          %213 = dma.done [#allocation7], 2048
        $region44: #{tpu_custom_call.1} parent=31 // pred_fallthru
          _
        %s214 = sand.u32 %s41, 1
        %s215 = scalar_lea.sflag [#allocation4], %s214
        %s216 = sand.u32 %s41, 1
        %s217 = smul.addr %s216, 8
        %s218 = scalar_lea.vmem [#allocation3], %s217
        %p219 = pneg %p54
        %p220 = pneg %p51
        %p221 = pneg %p80
        %p222 = pneg %p77
        %p223 = pneg %p101
        %p224 = pneg %p98
        %p225 = pneg %p127
        %p226 = pneg %p124
        %s227 = sand.u32 %s114, 1
        %s228 = scalar_lea.sflag [#allocation5], %s227
        %s229 = sand.u32 %s114, 1
        %s230 = smul.addr %s229, 8
        %s231 = scalar_lea.vmem [#allocation9], %s230
        %p232 = scmp.eq.s32.totalorder %s26, 0
        // Predicated region
        $region45: #{tpu_custom_call.1} parent=31 // pred_check
          %p233 = pneg %p232
        $region46: #{tpu_custom_call.1} parent=31 // pred_check_branch
          %235 = sbr.rel (%p233) target = $region48
        $region47: #{tpu_custom_call.1} parent=31 // pred_region
          %236 = vst [vmem:[#allocation2] sm:$0xff] 0
          %237 = vst [vmem:[#allocation2 + $0x8] sm:$0xff] 0
          %238 = vst [vmem:[#allocation2 + $0x10] sm:$0xff] 0
          %239 = vst [vmem:[#allocation2 + $0x18] sm:$0xff] 0
          %240 = vst [vmem:[#allocation2 + $0x20] sm:$0xff] 0
          %241 = vst [vmem:[#allocation2 + $0x28] sm:$0xff] 0
          %242 = vst [vmem:[#allocation2 + $0x30] sm:$0xff] 0
          %243 = vst [vmem:[#allocation2 + $0x38] sm:$0xff] 0
        $region48: #{tpu_custom_call.1} parent=31 // pred_fallthru
          _
        %v244 = vld [vmem:[#allocation6] sm:$0xff]
        %s245 = smul.u32 %s25, 8
        %v246 = vstv %s245
        %v247 = vsub.s32 %v244, %v246
        %vm248 = vcmp.eq.s32.totalorder %v247, 0
        %vm249 = vcmp.eq.s32.totalorder %v247, 1
        %vm250 = vcmp.eq.s32.totalorder %v247, 2
        %vm251 = vcmp.eq.s32.totalorder %v247, 3
        %vm252 = vcmp.eq.s32.totalorder %v247, 4
        %vm253 = vcmp.eq.s32.totalorder %v247, 5
        %vm254 = vcmp.eq.s32.totalorder %v247, 6
        %vm255 = vcmp.eq.s32.totalorder %v247, 7
        %v256 = vsel %vm248, 1, 0
        %v257 = vsel %vm249, 1, 0
        %v258 = vsel %vm250, 1, 0
        %v259 = vsel %vm251, 1, 0
        %v260 = vsel %vm252, 1, 0
        %v261 = vsel %vm253, 1, 0
        %v262 = vsel %vm254, 1, 0
        %v263 = vsel %vm255, 1, 0
        %v264 = vld [vmem:[#allocation2] sm:$0xff]
        %v265 = vld [vmem:[#allocation2 + $0x8] sm:$0xff]
        %v266 = vld [vmem:[#allocation2 + $0x10] sm:$0xff]
        %v267 = vld [vmem:[#allocation2 + $0x18] sm:$0xff]
        %v268 = vld [vmem:[#allocation2 + $0x20] sm:$0xff]
        %v269 = vld [vmem:[#allocation2 + $0x28] sm:$0xff]
        %v270 = vld [vmem:[#allocation2 + $0x30] sm:$0xff]
        %v271 = vld [vmem:[#allocation2 + $0x38] sm:$0xff]
        %v272 = vadd.s32 %v264, %v256
        %v273 = vadd.s32 %v265, %v257
        %v274 = vadd.s32 %v266, %v258
        %v275 = vadd.s32 %v267, %v259
        %v276 = vadd.s32 %v268, %v260
        %v277 = vadd.s32 %v269, %v261
        %v278 = vadd.s32 %v270, %v262
        %v279 = vadd.s32 %v271, %v263
        %280 = vst [vmem:[#allocation2] sm:$0xff] %v272
        %281 = vst [vmem:[#allocation2 + $0x8] sm:$0xff] %v273
        %282 = vst [vmem:[#allocation2 + $0x10] sm:$0xff] %v274
        %283 = vst [vmem:[#allocation2 + $0x18] sm:$0xff] %v275
        %284 = vst [vmem:[#allocation2 + $0x20] sm:$0xff] %v276
        %285 = vst [vmem:[#allocation2 + $0x28] sm:$0xff] %v277
        %286 = vst [vmem:[#allocation2 + $0x30] sm:$0xff] %v278
        %287 = vst [vmem:[#allocation2 + $0x38] sm:$0xff] %v279
        // Predicated region
        $region49: #{tpu_custom_call.1} parent=31 // pred_check
          %p288 = pneg %p232
        $region50: #{tpu_custom_call.1} parent=31 // pred_check_branch
          %290 = sbr.rel (%p288) target = $region52
        $region51: #{tpu_custom_call.1} parent=31 // pred_region
          %v291 = vld [vmem:[#allocation2] sm:$0xff]
          %v292 = vld [vmem:[#allocation2 + $0x8] sm:$0xff]
          %v293 = vld [vmem:[#allocation2 + $0x10] sm:$0xff]
          %v294 = vld [vmem:[#allocation2 + $0x18] sm:$0xff]
          %v295 = vld [vmem:[#allocation2 + $0x20] sm:$0xff]
          %v296 = vld [vmem:[#allocation2 + $0x28] sm:$0xff]
          %v297 = vld [vmem:[#allocation2 + $0x30] sm:$0xff]
          %v298 = vld [vmem:[#allocation2 + $0x38] sm:$0xff]
          %v299 = vrot.slane %v291, 4
          %v300 = vadd.s32 %v291, %v299
          %v301 = vrot.slane %v300, 2
          %v302 = vadd.s32 %v300, %v301
          %v303 = vrot.slane %v302, 1
          %v304 = vadd.s32 %v302, %v303
          %v305 = vrot.slane %v292, 4
          %v306 = vadd.s32 %v292, %v305
          %v307 = vrot.slane %v306, 2
          %v308 = vadd.s32 %v306, %v307
          %v309 = vrot.slane %v308, 1
          %v310 = vadd.s32 %v308, %v309
          %v311 = vrot.slane %v293, 4
          %v312 = vadd.s32 %v293, %v311
          %v313 = vrot.slane %v312, 2
          %v314 = vadd.s32 %v312, %v313
          %v315 = vrot.slane %v314, 1
          %v316 = vadd.s32 %v314, %v315
          %v317 = vrot.slane %v294, 4
          %v318 = vadd.s32 %v294, %v317
          %v319 = vrot.slane %v318, 2
          %v320 = vadd.s32 %v318, %v319
          %v321 = vrot.slane %v320, 1
          %v322 = vadd.s32 %v320, %v321
          %v323 = vrot.slane %v295, 4
          %v324 = vadd.s32 %v295, %v323
          %v325 = vrot.slane %v324, 2
          %v326 = vadd.s32 %v324, %v325
          %v327 = vrot.slane %v326, 1
          %v328 = vadd.s32 %v326, %v327
          %v329 = vrot.slane %v296, 4
          %v330 = vadd.s32 %v296, %v329
          %v331 = vrot.slane %v330, 2
          %v332 = vadd.s32 %v330, %v331
          %v333 = vrot.slane %v332, 1
          %v334 = vadd.s32 %v332, %v333
          %v335 = vrot.slane %v297, 4
          %v336 = vadd.s32 %v297, %v335
          %v337 = vrot.slane %v336, 2
          %v338 = vadd.s32 %v336, %v337
          %v339 = vrot.slane %v338, 1
          %v340 = vadd.s32 %v338, %v339
          %v341 = vrot.slane %v298, 4
          %v342 = vadd.s32 %v298, %v341
          %v343 = vrot.slane %v342, 2
          %v344 = vadd.s32 %v342, %v343
          %v345 = vrot.slane %v344, 1
          %v346 = vadd.s32 %v344, %v345
          %vm347 = vcmask 1041409
          %v348 = vsel %vm347, %v310, %v304
          %vm349 = vcmask 1042434
          %v350 = vsel %vm349, %v316, %v348
          %vm351 = vcmask 1043459
          %v352 = vsel %vm351, %v322, %v350
          %vm353 = vcmask 1044484
          %v354 = vsel %vm353, %v328, %v352
          %vm355 = vcmask 1045509
          %v356 = vsel %vm355, %v334, %v354
          %vm357 = vcmask 1046534
          %v358 = vsel %vm357, %v340, %v356
          %vm359 = vcmask 1047559
          %v360 = vsel %vm359, %v346, %v358
          %v361 = vand.u32 %v360, 65535
          %v362 = vshrl.u32 %v360, 16
          %v363 = vcvt.s32.f32 %v361
          %v364 = vcvt.s32.f32 %v362
          %365 = vadd.xlane.f32.xlu0 %v363
          %v366 = vpop.xlane.xlu0 %365
          %367 = vadd.xlane.f32.xlu0 %v364
          %v368 = vpop.xlane.xlu0 %367
          %v369 = vcvt.f32.s32 %v366
          %v370 = vcvt.f32.s32 %v368
          %v371 = vshll.u32 %v370, 16
          %v372 = vadd.s32 %v371, %v369
          %vm373 = vcmp.lt.s32.totalorder %v372, 15
          %v374 = vsel %vm373, %v372, 15
          %v375 = vlaneseq
          %v376 = vand.u32 %v375, 127
          %v377 = vsub.s32 %v376, 8
          %vm378 = vcmp.eq.s32.totalorder %v377, %v374
          %v379 = vsel %vm378, 1, 0
          %v380 = vcvt.s32.f32 %v379
          %v381 = vld [vmem:[%s201] sm:$0xff]
          %v382 = vadd.f32 %v381, %v380
          %v383 = vld [vmem:[#allocation8] sm:$0xff]
          %v384 = vld [vmem:[#allocation8 + $0x8] sm:$0xff]
          %v385 = vld [vmem:[#allocation8 + $0x10] sm:$0xff]
          %v386 = vld [vmem:[#allocation8 + $0x18] sm:$0xff]
          %v387 = vld [vmem:[#allocation8 + $0x20] sm:$0xff]
          %v388 = vld [vmem:[#allocation8 + $0x28] sm:$0xff]
          %v389 = vld [vmem:[#allocation8 + $0x30] sm:$0xff]
          %v390 = vld [vmem:[#allocation8 + $0x38] sm:$0xff]
          %v391 = vld [vmem:[#allocation8 + $0x40] sm:$0xff]
          %v392 = vld [vmem:[#allocation8 + $0x48] sm:$0xff]
          %v393 = vld [vmem:[#allocation8 + $0x50] sm:$0xff]
          %v394 = vld [vmem:[#allocation8 + $0x58] sm:$0xff]
          %v395 = vld [vmem:[#allocation8 + $0x60] sm:$0xff]
          %v396 = vld [vmem:[#allocation8 + $0x68] sm:$0xff]
          %v397 = vld [vmem:[#allocation8 + $0x70] sm:$0xff]
          %v398 = vld [vmem:[#allocation8 + $0x78] sm:$0xff]
          %399 = vmatprep.subr.mxu0 0.0
          %400 = vmatpush1.msra.mxu0 %v383
          %401 = vmatprep.subr.mxu0 0.0
          %402 = vmatpush1.msra.mxu0 %v384
          %403 = vmatprep.subr.mxu0 0.0
          %404 = vmatpush1.msra.mxu0 %v385
          %405 = vmatprep.subr.mxu0 0.0
          %406 = vmatpush1.msra.mxu0 %v386
          %407 = vmatprep.subr.mxu0 0.0
          %408 = vmatpush1.msra.mxu0 %v387
          %409 = vmatprep.subr.mxu0 0.0
          %410 = vmatpush1.msra.mxu0 %v388
          %411 = vmatprep.subr.mxu0 0.0
          %412 = vmatpush1.msra.mxu0 %v389
          %413 = vmatprep.subr.mxu0 0.0
          %414 = vmatpush1.msra.mxu0 %v390
          %415 = vmatprep.subr.mxu0 0.0
          %416 = vmatpush1.msra.mxu0 %v391
          %417 = vmatprep.subr.mxu0 0.0
          %418 = vmatpush1.msra.mxu0 %v392
          %419 = vmatprep.subr.mxu0 0.0
          %420 = vmatpush1.msra.mxu0 %v393
          %421 = vmatprep.subr.mxu0 0.0
          %422 = vmatpush1.msra.mxu0 %v394
          %423 = vmatprep.subr.mxu0 0.0
          %424 = vmatpush1.msra.mxu0 %v395
          %425 = vmatprep.subr.mxu0 0.0
          %426 = vmatpush1.msra.mxu0 %v396
          %427 = vmatprep.subr.mxu0 0.0
          %428 = vmatpush1.msra.mxu0 %v397
          %429 = vmatprep.subr.mxu0 0.0
          %430 = vmatpush1.msra.mxu0 %v398
          %431 = vmatprep.subr.mxu0 0.0
          %432 = vmatpush1.msra.mxu0 0.0
          %433 = vmatprep.subr.mxu0 0.0
          %434 = vmatpush1.msra.mxu0 0.0
          %435 = vmatprep.subr.mxu0 0.0
          %436 = vmatpush1.msra.mxu0 0.0
          %437 = vmatprep.subr.mxu0 0.0
          %438 = vmatpush1.msra.mxu0 0.0
          %439 = vmatprep.subr.mxu0 0.0
          %440 = vmatpush1.msra.mxu0 0.0
          %441 = vmatprep.subr.mxu0 0.0
          %442 = vmatpush1.msra.mxu0 0.0
          %443 = vmatprep.subr.mxu0 0.0
          %444 = vmatpush1.msra.mxu0 0.0
          %445 = vmatprep.subr.mxu0 0.0
          %446 = vmatpush1.msra.mxu0 0.0
          %447 = vmatprep.subr.mxu0 0.0
          %448 = vmatpush1.msra.mxu0 0.0
          %449 = vmatprep.subr.mxu0 0.0
          %450 = vmatpush1.msra.mxu0 0.0
          %451 = vmatprep.subr.mxu0 0.0
          %452 = vmatpush1.msra.mxu0 0.0
          %453 = vmatprep.subr.mxu0 0.0
          %454 = vmatpush1.msra.mxu0 0.0
          %455 = vmatprep.subr.mxu0 0.0
          %456 = vmatpush1.msra.mxu0 0.0
          %457 = vmatprep.subr.mxu0 0.0
          %458 = vmatpush1.msra.mxu0 0.0
          %459 = vmatprep.subr.mxu0 0.0
          %460 = vmatpush1.msra.mxu0 0.0
          %461 = vmatprep.subr.mxu0 0.0
          %462 = vmatpush1.msra.mxu0 0.0
          %463 = vmatprep.mubr.f32.mxu0 0.0
          %464 = vmatmul.mubr.f32.gmra.mrb[0].mxu0 %v382
          %v465 = vpop.f32.mrb[0].mxu0
          %v466 = vadd.f32 0.0, %v465
          %v467 = vpop.f32.mrb[0].mxu0
          %468 = vdwg.mxu0
          %469 = vst [vmem:[%s231] sm:$0xff] %v466
        $region52: #{tpu_custom_call.1} parent=31 // pred_fallthru
          _
        %s470 = sand.u32 %s114, 1
        %s471 = scalar_lea.sflag [#allocation5], %s470
        %s472 = sand.u32 %s114, 1
        %s473 = smul.addr %s472, 8
        %s474 = scalar_lea.vmem [#allocation9], %s473
        // Predicated region
        $region53: #{tpu_custom_call.1} parent=31 // pred_check
          %p475 = pneg %p124
        $region54: #{tpu_custom_call.1} parent=31 // pred_check_branch
          %477 = sbr.rel (%p475) target = $region56
        $region55: #{tpu_custom_call.1} parent=31 // pred_region
          %s479 = ssub.s32 128, 128
          %480 = vsyncadd %s471, %s479
          %s481 = smul.addr %s25, 128
          %s482 = scalar_lea.hbm %s3, %s481
          %s484 = sshll.u32 %s474, 4
          %s485 = int_to_ptr.vmem [resolvable:$true] %s484
          %487 = dma.vmem_to_hbm [thread:$0]  %s485, 128, %s482, %s471
        $region56: #{tpu_custom_call.1} parent=31 // pred_fallthru
          _
      $region32: #{tpu_custom_call.1} parent=5 // pred_fallthru
        _
      %p488 = scmp.le.s32.totalorder 2, %s16
      // Predicated region
      $region57: #{tpu_custom_call.1} parent=5 // pred_check
        %p489 = pneg %p488
      $region58: #{tpu_custom_call.1} parent=5 // pred_check_branch
        %491 = sbr.rel (%p489) target = $region60
      $region59: #{tpu_custom_call.1} parent=5 // pred_region
        %s492 = ssub.s32 %s16, 2
        // Predicated region
        $region61: #{tpu_custom_call.1} parent=59 // pred_check
          %p493 = pneg %p130
        $region62: #{tpu_custom_call.1} parent=59 // pred_check_branch
          %495 = sbr.rel (%p493) target = $region64
        $region63: #{tpu_custom_call.1} parent=59 // pred_region
          %s496 = sand.u32 %s115, 1
          %s497 = scalar_lea.sflag [#allocation5], %s496
          %s498 = sand.u32 %s115, 1
          %s499 = smul.addr %s498, 8
          %s500 = scalar_lea.vmem [#allocation9], %s499
          %501 = dma.done %s497, 128
        $region64: #{tpu_custom_call.1} parent=59 // pred_fallthru
          _
      $region60: #{tpu_custom_call.1} parent=5 // pred_fallthru
        _
    $region6: #{tpu_custom_call.1} parent=1 // loop_footer
      %s20 = sadd.s32 1, %s16
    $region7: #{tpu_custom_call.1} parent=1 // loop_footer_branch
      %15 = sbr.rel target = $region3
    $region8: #{tpu_custom_call.1} parent=1 // loop_exit
      _
    %502 = vsyncpa [#allocation4], 1
    %s503 = scalar_lea.sflag [#allocation4], 1
    %504 = vsyncpa %s503, 1
    %505 = vsyncpa [#allocation7], 1
    %506 = vsyncpa [#allocation5], 1
    %s507 = scalar_lea.sflag [#allocation5], 1
    %508 = vsyncpa %s507, 1

</llo_original>
